<compile_context>
chip_gen: v5e
topology: v5e:2x2
jax: 0.10.0
libtpu: 0.0.40
codegen_flags: <defaults>
</compile_context>

<pallas_src>
import functools

import jax
import jax.numpy as jnp
from jax.experimental import pallas as pl
from jax.experimental.pallas import tpu as pltpu

_LANES = 128


def _round_up(x, m):
    return ((x + m - 1) // m) * m


# ---------------------------------------------------------------------------
# Kernel 1: fused projection (feat_src | residual | el | er) per node tile.
# ---------------------------------------------------------------------------
def _proj_kernel(feat_ref, w_ref, pre_ref, elt_ref, *, proj_cols):
    hw = jnp.dot(feat_ref[...], w_ref[...],
                 preferred_element_type=jnp.float32)          # (tile, proj_cols)
    tile = hw.shape[0]
    pad = pre_ref.shape[1] - proj_cols
    if pad > 0:
        # Pad to the full lane width so the store is a single unmasked vst slab.
        hw_full = jnp.concatenate(
            [hw, jnp.zeros((tile, pad), jnp.float32)], axis=-1)
    else:
        hw_full = hw
    pre_ref[...] = hw_full                                     # lane-dense store
    # el lives in columns [proj_cols-16, proj_cols-8); store it lane-major
    # (heads on sublanes, nodes on lanes) for the attention kernel.
    elt_ref[...] = jnp.transpose(hw[:, proj_cols - 16:proj_cols - 8])  # (8, tile)


# ---------------------------------------------------------------------------
# Kernel 2: per-destination-tile masked softmax + aggregation + residual + ELU
#           + head mean.
# ---------------------------------------------------------------------------
def _attn_kernel(pre_ref, elt_ref, adj_ref, out_ref, *, num_heads, out_feats,
                 negative_slope, tile_dst):
    H, F = num_heads, out_feats
    HF = H * F

    row0 = pl.multiple_of(pl.program_id(0) * tile_dst, tile_dst)
    dst = pre_ref[pl.ds(row0, tile_dst), :]        # (tile, 128) this tile's dst rows
    edge = adj_ref[...] > 0                        # (tile, N_pad) adjacency mask

    inv_h = 1.0 / H
    acc = jnp.zeros((tile_dst, F), jnp.float32)

    # Static per-head loop (H is tiny): all tensors below are 2D with N_src on
    # the 128-lane axis, so reductions are lane-axis reductions.
    for h in range(H):
        el_row = elt_ref[h:h + 1, :]                         # (1, N_pad)  source term
        er_col = dst[:, 2 * HF + 8 + h:2 * HF + 9 + h]       # (tile, 1)   dest term
        s = er_col + el_row                                  # (tile, N_pad)
        s = jnp.maximum(s, negative_slope * s)               # leaky_relu (0<=slope<=1)
        s = jnp.where(edge, s, -1e30)                        # mask non-edges
        m = jnp.max(s, axis=-1, keepdims=True)               # (tile, 1) lane reduce
        p = jnp.exp(s - m)                                   # masked lanes underflow to 0
        denom = jnp.sum(p, axis=-1, keepdims=True)           # (tile, 1)
        # Aggregate un-normalized probabilities on the MXU, then fold the
        # softmax normalization into the small (tile, F) result.
        agg = jnp.dot(p, pre_ref[:, h * F:(h + 1) * F],
                      preferred_element_type=jnp.float32)    # (tile, F)
        rst = agg * pl.reciprocal(denom, approx=True)
        rst = rst + dst[:, HF + h * F:HF + (h + 1) * F]      # residual (res_fc)
        rst = jnp.where(rst > 0, rst, jnp.expm1(rst))        # ELU activation
        acc = acc + rst * inv_h                              # fold mean over heads

    # Lane-dense output slab (unmasked vst); sliced to F outside the kernel.
    out_ref[...] = jnp.concatenate(
        [acc, jnp.zeros((tile_dst, out_ref.shape[1] - F), jnp.float32)], axis=-1)


# ---------------------------------------------------------------------------
# Wrapper
# ---------------------------------------------------------------------------
def egl_gat_single_layer(feat, w_fc, attn_l, attn_r, w_res, adj, *,
                         num_heads, out_feats, negative_slope=0.2,
                         tile_nodes=128):
    """Single EglGATConv (dense adjacency) + mean over heads -> logits (N, F)."""
    N, in_dim = feat.shape
    H, F = num_heads, out_feats
    HF = H * F
    if tile_nodes % _LANES != 0:
        raise ValueError("tile_nodes must be a multiple of 128")
    # Packed per-node table columns: [feat_src (HF) | res (HF) | el (8) | er (8)]
    proj_cols = 2 * HF + 16
    pre_w = max(_LANES, _round_up(proj_cols, _LANES))
    out_w = max(_LANES, _round_up(F, _LANES))
    n_pad = _round_up(max(N, tile_nodes), tile_nodes)
    grid = (n_pad // tile_nodes,)

    f32 = jnp.float32
    feat_p = jnp.zeros((n_pad, in_dim), f32).at[:N].set(feat.astype(f32))
    adj_i8 = jnp.zeros((n_pad, n_pad), jnp.int8).at[:N, :N].set(
        (adj > 0).astype(jnp.int8))

    # Fold the per-head attention vectors into (HF, 8) block-diagonal matrices
    # so el / er come out of the SAME fused MXU matmul as the projections.
    def head_mat(attn):
        sel = jnp.eye(H, 8, dtype=f32)                       # column h selects head h
        return (attn.astype(f32)[:, :, None] * sel[:, None, :]).reshape(HF, 8)

    w_fc = w_fc.astype(f32)
    w_all = jnp.concatenate(
        [w_fc, w_res.astype(f32), w_fc @ head_mat(attn_l), w_fc @ head_mat(attn_r)],
        axis=1)                                              # (in_dim, proj_cols)

    pre, elt = pl.pallas_call(
        functools.partial(_proj_kernel, proj_cols=proj_cols),
        grid=grid,
        in_specs=[pl.BlockSpec((tile_nodes, in_dim), lambda i: (i, 0)),
                  pl.BlockSpec((in_dim, proj_cols), lambda i: (0, 0))],
        out_specs=[pl.BlockSpec((tile_nodes, pre_w), lambda i: (i, 0)),
                   pl.BlockSpec((8, tile_nodes), lambda i: (0, i))],
        out_shape=[jax.ShapeDtypeStruct((n_pad, pre_w), f32),
                   jax.ShapeDtypeStruct((8, n_pad), f32)],
        compiler_params=pltpu.CompilerParams(
            dimension_semantics=("parallel",)),
    )(feat_p, w_all)

    # VMEM budget: resident node table + el^T, double-buffered adj/out tiles,
    # plus headroom for the per-head (tile, N_pad) score/prob temporaries.
    # (Cap well under v7x's 64 MiB; for larger graphs shrink tile_nodes.)
    resident = n_pad * pre_w * 4 + 8 * n_pad * 4
    per_tile = 2 * tile_nodes * n_pad + 2 * tile_nodes * out_w * 4
    temps = 4 * tile_nodes * n_pad * 4
    vmem_limit = int(min(max(resident + per_tile + temps + (8 << 20), 32 << 20),
                         48 << 20))

    out_pad = pl.pallas_call(
        functools.partial(_attn_kernel, num_heads=H, out_feats=F,
                          negative_slope=negative_slope, tile_dst=tile_nodes),
        grid=grid,
        in_specs=[pl.BlockSpec((n_pad, pre_w), lambda i: (0, 0)),   # resident
                  pl.BlockSpec((8, n_pad), lambda i: (0, 0)),       # resident
                  pl.BlockSpec((tile_nodes, n_pad), lambda i: (i, 0))],
        out_specs=pl.BlockSpec((tile_nodes, out_w), lambda i: (i, 0)),
        out_shape=jax.ShapeDtypeStruct((n_pad, out_w), f32),
        compiler_params=pltpu.CompilerParams(
            dimension_semantics=("parallel",),
            vmem_limit_bytes=vmem_limit),
    )(pre, elt, adj_i8)

    return out_pad[:N, :F]


# ---------------------------------------------------------------------------
# Pure-JAX reference (matches the PyTorch module in eval mode).
# ---------------------------------------------------------------------------
def _reference(feat, w_fc, attn_l, attn_r, w_res, adj, num_heads, out_feats,
               negative_slope=0.2):
    N = feat.shape[0]
    fs = (feat @ w_fc).reshape(N, num_heads, out_feats)
    el = jnp.sum(fs * attn_l[None], -1)
    er = jnp.sum(fs * attn_r[None], -1)
    e = el[None, :, :] + er[:, None, :]
    e = jnp.where(e > 0, e, negative_slope * e)
    mask = (adj > 0)[:, :, None]
    e = jnp.where(mask, e, -jnp.inf)
    alpha = jax.nn.softmax(e, axis=1)
    alpha = jnp.where(mask, alpha, 0.0)
    rst = jnp.einsum('vuh,uhf->vhf', alpha, fs)
    rst = rst + (feat @ w_res).reshape(N, num_heads, out_feats)
    rst = jax.nn.elu(rst)
    return rst.mean(axis=1)


if __name__ == "__main__":
    N = 192          # nodes (pads to 256 -> 2 grid tiles, exercises padding)
    in_dim = 32
    num_classes = 8  # out_feats of the single GAT layer
    heads = 4
    negative_slope = 0.2

    key = jax.random.PRNGKey(0)
    k_feat, k_fc, k_al, k_ar, k_res = jax.random.split(key, 5)

    # Xavier-normal-style init with gain = calculate_gain('relu') = sqrt(2),
    # matching reset_parameters() shapes (deterministic synthetic weights).
    gain = jnp.sqrt(2.0)
    std_fc = gain * jnp.sqrt(2.0 / (in_dim + heads * num_classes))
    std_attn = gain * jnp.sqrt(2.0 / (heads + num_classes))

    feat = jax.random.normal(k_feat, (N, in_dim), jnp.float32)
    w_fc = std_fc * jax.random.normal(k_fc, (in_dim, heads * num_classes), jnp.float32)
    attn_l = std_attn * jax.random.normal(k_al, (heads, num_classes), jnp.float32)
    attn_r = std_attn * jax.random.normal(k_ar, (heads, num_classes), jnp.float32)
    w_res = std_fc * jax.random.normal(k_res, (in_dim, heads * num_classes), jnp.float32)

    # Deterministic synthetic graph: self-loops + ring edges in both directions.
    # adj[dst, src] = 1 if edge src -> dst exists.
    eye = jnp.eye(N, dtype=jnp.float32)
    adj = jnp.minimum(eye + jnp.roll(eye, 1, axis=0) + jnp.roll(eye, -1, axis=0), 1.0)

    # TODO(synk): feat_drop / attn_drop (rate 0.0) are identity at inference and
    # are omitted.

    out = egl_gat_single_layer(feat, w_fc, attn_l, attn_r, w_res, adj,
                               num_heads=heads, out_feats=num_classes,
                               negative_slope=negative_slope)
    out = jax.block_until_ready(out)

    ref = _reference(feat, w_fc, attn_l, attn_r, w_res, adj, heads, num_classes,
                     negative_slope)
    assert out.shape == (N, num_classes)
    # Tolerance accommodates the approximate EUP reciprocal used for the
    # softmax normalization.
    assert jnp.allclose(out, ref, atol=5e-3, rtol=5e-3), (
        float(jnp.max(jnp.abs(out - ref))))

    print("KERNEL_OK")
</pallas_src>

<mosaic_0001>
module attributes {stable_mosaic.version = 11 : i64} {
  func.func @_proj_kernel(%arg0: i32, %arg1: memref<128x32xf32, #tpu.memory_space<vmem>>, %arg2: memref<32x80xf32, #tpu.memory_space<vmem>>, %arg3: memref<128x128xf32, #tpu.memory_space<vmem>>, %arg4: memref<8x128xf32, #tpu.memory_space<vmem>>) attributes {dimension_semantics = [#tpu.dimension_semantics<parallel>], iteration_bounds = array<i64: 2>, scalar_prefetch = 0 : i64, scratch_operands = 0 : i64, tpu.core_type = #tpu.core_type<tc>, window_params = [{transform_indices = @transform_0, window_bounds = array<i64: 128, 32>}, {pipeline_mode = #tpu.pipeline_mode<synchronous>, transform_indices = @transform_1, window_bounds = array<i64: 32, 80>}, {transform_indices = @transform_2, window_bounds = array<i64: 128, 128>}, {transform_indices = @transform_3, window_bounds = array<i64: 8, 128>}]} {
    %c0 = arith.constant 0 : index
    %c0_0 = arith.constant 0 : index
    %0 = vector.load %arg1[%c0, %c0_0] : memref<128x32xf32, #tpu.memory_space<vmem>>, vector<128x32xf32>
    %c0_1 = arith.constant 0 : index
    %c0_2 = arith.constant 0 : index
    %1 = vector.load %arg2[%c0_1, %c0_2] : memref<32x80xf32, #tpu.memory_space<vmem>>, vector<32x80xf32>
    %cst = arith.constant dense<0.000000e+00> : vector<128x80xf32>
    %2 = tpu.matmul %0, %1, %cst {dimension_numbers = #tpu.dot_dimension_numbers<[1], [0], [0], [1], [0, 0, 1, 1], [], []>} : vector<128x32xf32>, vector<32x80xf32>, vector<128x80xf32> -> vector<128x80xf32>
    %cst_3 = arith.constant 0.000000e+00 : f32
    %3 = vector.broadcast %cst_3 : f32 to vector<128x48xf32>
    %4 = tpu.concatenate %2, %3 in 1 : vector<128x80xf32>, vector<128x48xf32> -> vector<128x128xf32>
    %c0_4 = arith.constant 0 : index
    %c0_5 = arith.constant 0 : index
    %5 = vector.load %arg3[%c0_4, %c0_5] : memref<128x128xf32, #tpu.memory_space<vmem>>, vector<128x128xf32>
    tpu.vector_store %arg3[%c0_4, %c0_5], %4 {strides = array<i32>} : memref<128x128xf32, #tpu.memory_space<vmem>>, vector<128x128xf32>,
    %6 = vector.extract_strided_slice %2 {offsets = [0, 64], sizes = [128, 8], strides = [1, 1]} : vector<128x80xf32> to vector<128x8xf32>
    %7 = tpu.transpose %6, [1, 0] : vector<128x8xf32> -> vector<8x128xf32>
    %c0_6 = arith.constant 0 : index
    %c0_7 = arith.constant 0 : index
    %8 = vector.load %arg4[%c0_6, %c0_7] : memref<8x128xf32, #tpu.memory_space<vmem>>, vector<8x128xf32>
    tpu.vector_store %arg4[%c0_6, %c0_7], %7 {strides = array<i32>} : memref<8x128xf32, #tpu.memory_space<vmem>>, vector<8x128xf32>,
    return
  }
  func.func @transform_0(%arg0: i32) -> (i32, i32) {
    %c0_i32 = arith.constant 0 : i32
    %c0_i32_0 = arith.constant 0 : i32
    return %arg0, %c0_i32 : i32, i32
  }
  func.func @transform_1(%arg0: i32) -> (i32, i32) {
    %c0_i32 = arith.constant 0 : i32
    %c0_i32_0 = arith.constant 0 : i32
    %c0_i32_1 = arith.constant 0 : i32
    return %c0_i32, %c0_i32_0 : i32, i32
  }
  func.func @transform_2(%arg0: i32) -> (i32, i32) {
    %c0_i32 = arith.constant 0 : i32
    %c0_i32_0 = arith.constant 0 : i32
    return %arg0, %c0_i32 : i32, i32
  }
  func.func @transform_3(%arg0: i32) -> (i32, i32) {
    %c0_i32 = arith.constant 0 : i32
    %c0_i32_0 = arith.constant 0 : i32
    return %c0_i32, %arg0 : i32, i32
  }
}

</mosaic_0001>

<llo_original>
// kernel: tpu_custom_call.1
$region0: #{tpu_custom_call.1}
  #allocation0 [shape = 'u32[]', space=smem, size = 0x4, offset = 0x4, fixed_abs, tag = 'smem constant byte address 0x4 - core index']
  #allocation1 [shape = 'u32[72,128]{1,0:T(1,128)}', space=vmem, size = 0x9000, scoped, tag = 'internal scratch']
  %s0 = inlined_call_operand.vmem [shape: f32[256,32], index: 0, kind: input, shape index: {}]
  %s1 = inlined_call_operand.vmem [shape: f32[32,80], index: 1, kind: input, shape index: {}]
  %s2 = inlined_call_operand.hbm [shape: f32[256,128], index: 2, kind: output, shape index: {0}]
  %s3 = inlined_call_operand.hbm [shape: f32[8,256], index: 3, kind: output, shape index: {1}]
  %4 = xla_tuple %s2, %s3
  %s5 = sld [smem:[#allocation0]]
  $region49: #{tpu_custom_call.1} parent=0
    _
  %s7 = ssub.s32 1, %s5
  %s8 = scalar_select 0, %s7, %s5
  $region1: #{tpu_custom_call.1} parent=0
    #allocation2 [shape = 'u8[131072]{0}', space=vmem, size = 0x20000, scoped, tag = 'output window, operand 0']
    #allocation3 [shape = 's32[2]{0}', space=sflag, size = 0x8, scoped, tag = 'scoped memory for tpu_custom_call.1']
    #allocation4 [shape = 'u8[8192]{0}', space=vmem, size = 0x2000, scoped, tag = 'output window, operand 1']
    #allocation5 [shape = 's32[2]{0}', space=sflag, size = 0x8, scoped, tag = 'scoped memory for tpu_custom_call.1']
    %9 = vsyncpa [#allocation3], 0
    %s10 = scalar_lea.sflag [#allocation3], 1
    %11 = vsyncpa %s10, 0
    %12 = vsyncpa [#allocation5], 0
    %s13 = scalar_lea.sflag [#allocation5], 1
    %14 = vsyncpa %s13, 0
    loop: start=0, step=1, limit=4
    $region2: #{tpu_custom_call.1} parent=1 // loop_pre_header
      _
    $region3: #{tpu_custom_call.1} parent=1 // loop_header
      %s16 = sphi 0, %s20
      %p17 = scmp.ge.s32.totalorder %s16, 4
      %s26 = sphi 0, %s28
      %s29 = sphi 0, %s26
      %s30 = sphi 0, %s29
      %s46 = sphi 0, %s30
      %s50 = sphi 0, %s50
      %s52 = sphi 0, %s50
      %s53 = sphi 0, %s52
      %s67 = sphi 0, %s53
      %s73 = sphi 0, %s75
      %s76 = sphi 0, %s73
      %s77 = sphi 0, %s76
      %s93 = sphi 0, %s77
      %s99 = sphi 0, %s101
      %s102 = sphi 0, %s99
      %s103 = sphi 0, %s102
      %s119 = sphi 0, %s103
    $region4: #{tpu_custom_call.1} parent=1 // loop_header_branch
      %19 = sbr.rel (%p17) target = $region8
    $region5: #{tpu_custom_call.1} parent=1 // loop_body
      %s21 = ssub.s32 %s16, 1
      %s22 = ssub.s32 %s16, 2
      %s23 = sadd.s32 %s16, 1
      %s24 = ssub.s32 %s16, %s23
      %p25 = scmp.eq.s32.totalorder %s24, 0
      %s27 = sadd.s32 %s26, 1
      %s28 = scalar_select %p25, %s26, %s27
      %p31 = pneg %p25
      %p32 = scmp.eq.s32.totalorder %s16, 1
      %p33 = por %p31, %p32
      %p34 = scmp.ne.s32.totalorder %s26, %s29
      %p35 = scmp.eq.s32.totalorder %s16, 0
      %p36 = por %p34, %p35
      %p37 = scmp.ne.s32.totalorder %s26, %s29
      %p38 = scmp.eq.s32.totalorder %s21, 1
      %p39 = por %p37, %p38
      %p40 = scmp.ne.s32.totalorder %s29, %s30
      %p41 = scmp.eq.s32.totalorder %s21, 0
      %p42 = por %p40, %p41
      %p43 = scmp.ne.s32.totalorder %s29, %s30
      %p44 = scmp.eq.s32.totalorder %s22, 1
      %p45 = por %p43, %p44
      %p47 = scmp.ne.s32.totalorder %s30, %s46
      %p48 = scmp.eq.s32.totalorder %s22, 0
      %p49 = por %p47, %p48
      %s51 = sadd.s32 %s50, 1
      %p54 = scmp.eq.s32.totalorder %s16, 1
      %p55 = scmp.ne.s32.totalorder %s50, %s52
      %p56 = scmp.eq.s32.totalorder %s16, 0
      %p57 = por %p55, %p56
      %p58 = scmp.ne.s32.totalorder %s50, %s52
      %p59 = scmp.eq.s32.totalorder %s21, 1
      %p60 = por %p58, %p59
      %p61 = scmp.ne.s32.totalorder %s52, %s53
      %p62 = scmp.eq.s32.totalorder %s21, 0
      %p63 = por %p61, %p62
      %p64 = scmp.ne.s32.totalorder %s52, %s53
      %p65 = scmp.eq.s32.totalorder %s22, 1
      %p66 = por %p64, %p65
      %p68 = scmp.ne.s32.totalorder %s53, %s67
      %p69 = scmp.eq.s32.totalorder %s22, 0
      %p70 = por %p68, %p69
      %s71 = ssub.s32 %s16, %s23
      %p72 = scmp.eq.s32.totalorder %s71, 0
      %s74 = sadd.s32 %s73, 1
      %s75 = scalar_select %p72, %s73, %s74
      %p78 = pneg %p72
      %p79 = scmp.eq.s32.totalorder %s16, 1
      %p80 = por %p78, %p79
      %p81 = scmp.ne.s32.totalorder %s73, %s76
      %p82 = scmp.eq.s32.totalorder %s16, 0
      %p83 = por %p81, %p82
      %p84 = scmp.ne.s32.totalorder %s73, %s76
      %p85 = scmp.eq.s32.totalorder %s21, 1
      %p86 = por %p84, %p85
      %p87 = scmp.ne.s32.totalorder %s76, %s77
      %p88 = scmp.eq.s32.totalorder %s21, 0
      %p89 = por %p87, %p88
      %p90 = scmp.ne.s32.totalorder %s76, %s77
      %p91 = scmp.eq.s32.totalorder %s22, 1
      %p92 = por %p90, %p91
      %p94 = scmp.ne.s32.totalorder %s77, %s93
      %p95 = scmp.eq.s32.totalorder %s22, 0
      %p96 = por %p94, %p95
      %s97 = ssub.s32 %s16, %s23
      %p98 = scmp.eq.s32.totalorder %s97, 0
      %s100 = sadd.s32 %s99, 1
      %s101 = scalar_select %p98, %s99, %s100
      %p104 = pneg %p98
      %p105 = scmp.eq.s32.totalorder %s16, 1
      %p106 = por %p104, %p105
      %p107 = scmp.ne.s32.totalorder %s99, %s102
      %p108 = scmp.eq.s32.totalorder %s16, 0
      %p109 = por %p107, %p108
      %p110 = scmp.ne.s32.totalorder %s99, %s102
      %p111 = scmp.eq.s32.totalorder %s21, 1
      %p112 = por %p110, %p111
      %p113 = scmp.ne.s32.totalorder %s102, %s103
      %p114 = scmp.eq.s32.totalorder %s21, 0
      %p115 = por %p113, %p114
      %p116 = scmp.ne.s32.totalorder %s102, %s103
      %p117 = scmp.eq.s32.totalorder %s22, 1
      %p118 = por %p116, %p117
      %p120 = scmp.ne.s32.totalorder %s103, %s119
      %p121 = scmp.eq.s32.totalorder %s22, 0
      %p122 = por %p120, %p121
      %p123 = scmp.le.s32.totalorder 1, %s16
      %p124 = scmp.lt.s32.totalorder %s16, 3
      %p125 = pnand %p123, %p124
      %p126 = pneg %p125
      // Predicated region
      $region9: #{tpu_custom_call.1} parent=5 // pred_check
        _
      $region10: #{tpu_custom_call.1} parent=5 // pred_check_branch
        %128 = sbr.rel (%p125) target = $region12
      $region11: #{tpu_custom_call.1} parent=5 // pred_region
        %s129 = ssub.s32 %s16, 1
        // Predicated region
        $region13: #{tpu_custom_call.1} parent=11 // pred_check
          %p130 = pneg %p63
        $region14: #{tpu_custom_call.1} parent=11 // pred_check_branch
          %132 = sbr.rel (%p130) target = $region16
        $region15: #{tpu_custom_call.1} parent=11 // pred_region
          _
        $region16: #{tpu_custom_call.1} parent=11 // pred_fallthru
          _
      $region12: #{tpu_custom_call.1} parent=5 // pred_fallthru
        _
      %p133 = scmp.lt.s32.totalorder %s16, 2
      // Predicated region
      $region17: #{tpu_custom_call.1} parent=5 // pred_check
        %p134 = pneg %p133
      $region18: #{tpu_custom_call.1} parent=5 // pred_check_branch
        %136 = sbr.rel (%p134) target = $region20
      $region19: #{tpu_custom_call.1} parent=5 // pred_region
        // Predicated region
        $region21: #{tpu_custom_call.1} parent=19 // pred_check
          %p137 = pneg %p36
        $region22: #{tpu_custom_call.1} parent=19 // pred_check_branch
          %139 = sbr.rel (%p137) target = $region24
        $region23: #{tpu_custom_call.1} parent=19 // pred_region
          %s140 = smul.u32 16, %s16
          %p141 = scmp.lt.s32.totalorder %s140, 31
          %s142 = scalar_select %p141, %s140, 31
          %s143 = smul.addr %s142, 8
          %s144 = scalar_lea.vmem %s0, %s143
          %s145 = smul.u32 16, %s16
        $region24: #{tpu_custom_call.1} parent=19 // pred_fallthru
          _
      $region20: #{tpu_custom_call.1} parent=5 // pred_fallthru
        _
      %p146 = scmp.le.s32.totalorder 1, %s16
      %p147 = scmp.lt.s32.totalorder %s16, 3
      %p148 = pnand %p146, %p147
      %p149 = pneg %p148
      // Predicated region
      $region25: #{tpu_custom_call.1} parent=5 // pred_check
        _
      $region26: #{tpu_custom_call.1} parent=5 // pred_check_branch
        %151 = sbr.rel (%p148) target = $region28
      $region27: #{tpu_custom_call.1} parent=5 // pred_region
        %s152 = ssub.s32 %s16, 1
        %s153 = smul.u32 16, %s21
        %p154 = scmp.lt.s32.totalorder %s153, 31
        %s155 = scalar_select %p154, %s153, 31
        %s156 = smul.addr %s155, 8
        %s157 = scalar_lea.vmem %s0, %s156
        %p158 = pneg %p42
        %p159 = pneg %p39
        %p160 = pneg %p63
        %p161 = pneg %p60
        %p162 = pneg %p89
        %p163 = pneg %p86
        %s164 = sand.u32 %s76, 1
        %s165 = scalar_lea.sflag [#allocation3], %s164
        %s166 = sand.u32 %s76, 1
        %s167 = smul.addr %s166, 128
        %s168 = scalar_lea.vmem [#allocation2], %s167
        %p169 = pneg %p115
        %p170 = pneg %p112
        %s171 = sand.u32 %s102, 1
        %s172 = scalar_lea.sflag [#allocation5], %s171
        %s173 = sand.u32 %s102, 1
        %s174 = smul.addr %s173, 8
        %s175 = scalar_lea.vmem [#allocation4], %s174
        %s176 = smul.u32 16, %s21
        %p177 = scmp.lt.s32.totalorder %s176, 31
        %s178 = scalar_select %p177, %s176, 31
        %s179 = smul.addr %s178, 8
        %s180 = scalar_lea.vmem %s0, %s179
        %s181 = smul.u32 16, %s21
        %s182 = smul.u32 16, %s21
        %v183 = vld [vmem:[%s180] sm:$0xff]
        %v184 = vld [vmem:[%s180 + $0x8] sm:$0xff]
        %v185 = vld [vmem:[%s180 + $0x10] sm:$0xff]
        %v186 = vld [vmem:[%s180 + $0x18] sm:$0xff]
        %v187 = vld [vmem:[%s180 + $0x20] sm:$0xff]
        %v188 = vld [vmem:[%s180 + $0x28] sm:$0xff]
        %v189 = vld [vmem:[%s180 + $0x30] sm:$0xff]
        %v190 = vld [vmem:[%s180 + $0x38] sm:$0xff]
        %v191 = vld [vmem:[%s180 + $0x40] sm:$0xff]
        %v192 = vld [vmem:[%s180 + $0x48] sm:$0xff]
        %v193 = vld [vmem:[%s180 + $0x50] sm:$0xff]
        %v194 = vld [vmem:[%s180 + $0x58] sm:$0xff]
        %v195 = vld [vmem:[%s180 + $0x60] sm:$0xff]
        %v196 = vld [vmem:[%s180 + $0x68] sm:$0xff]
        %v197 = vld [vmem:[%s180 + $0x70] sm:$0xff]
        %v198 = vld [vmem:[%s180 + $0x78] sm:$0xff]
        %v199 = vld [vmem:[%s1] sm:$0xff]
        %v200 = vld [vmem:[%s1 + $0x8] sm:$0xff]
        %v201 = vld [vmem:[%s1 + $0x10] sm:$0xff]
        %v202 = vld [vmem:[%s1 + $0x18] sm:$0xff]
        %vm203 = vcmask 261120
        %v205 = vsel %vm203, %v183, 0
        %v208 = vsel %vm203, %v184, 0
        %v211 = vsel %vm203, %v185, 0
        %v214 = vsel %vm203, %v186, 0
        %v217 = vsel %vm203, %v187, 0
        %v220 = vsel %vm203, %v188, 0
        %v223 = vsel %vm203, %v189, 0
        %v226 = vsel %vm203, %v190, 0
        %v229 = vsel %vm203, %v191, 0
        %v232 = vsel %vm203, %v192, 0
        %v235 = vsel %vm203, %v193, 0
        %v238 = vsel %vm203, %v194, 0
        %v241 = vsel %vm203, %v195, 0
        %v244 = vsel %vm203, %v196, 0
        %v247 = vsel %vm203, %v197, 0
        %v250 = vsel %vm203, %v198, 0
        %252 = vmatpush.msra.mxu0 0.0
        %253 = vmatpush.msra.mxu0 0.0
        %254 = vmatpush.msra.mxu0 0.0
        %255 = vmatpush.msra.mxu0 0.0
        %256 = vmatpush.msra.mxu0 0.0
        %257 = vmatpush.msra.mxu0 0.0
        %258 = vmatpush.msra.mxu0 0.0
        %259 = vmatpush.msra.mxu0 0.0
        %260 = vmatpush.msra.mxu0 0.0
        %261 = vmatpush.msra.mxu0 0.0
        %262 = vmatpush.msra.mxu0 0.0
        %263 = vmatpush.msra.mxu0 0.0
        %264 = vmatpush.msra.mxu0 %v202
        %265 = vmatpush.msra.mxu0 %v201
        %266 = vmatpush.msra.mxu0 %v200
        %267 = vmatpush.msra.mxu0 %v199
        %268 = vmatmul.f32.gmra.mxu0 %v205
        %v269 = vpop.f32.mrf.mxu0
        %v270 = vadd.f32 0.0, %v269
        %271 = vmatmul.f32.gmra.mxu0 %v208
        %v272 = vpop.f32.mrf.mxu0
        %v273 = vadd.f32 0.0, %v272
        %274 = vmatmul.f32.gmra.mxu0 %v211
        %v275 = vpop.f32.mrf.mxu0
        %v276 = vadd.f32 0.0, %v275
        %277 = vmatmul.f32.gmra.mxu0 %v214
        %v278 = vpop.f32.mrf.mxu0
        %v279 = vadd.f32 0.0, %v278
        %280 = vmatmul.f32.gmra.mxu0 %v217
        %v281 = vpop.f32.mrf.mxu0
        %v282 = vadd.f32 0.0, %v281
        %283 = vmatmul.f32.gmra.mxu0 %v220
        %v284 = vpop.f32.mrf.mxu0
        %v285 = vadd.f32 0.0, %v284
        %286 = vmatmul.f32.gmra.mxu0 %v223
        %v287 = vpop.f32.mrf.mxu0
        %v288 = vadd.f32 0.0, %v287
        %289 = vmatmul.f32.gmra.mxu0 %v226
        %v290 = vpop.f32.mrf.mxu0
        %v291 = vadd.f32 0.0, %v290
        %292 = vmatmul.f32.gmra.mxu0 %v229
        %v293 = vpop.f32.mrf.mxu0
        %v294 = vadd.f32 0.0, %v293
        %295 = vmatmul.f32.gmra.mxu0 %v232
        %v296 = vpop.f32.mrf.mxu0
        %v297 = vadd.f32 0.0, %v296
        %298 = vmatmul.f32.gmra.mxu0 %v235
        %v299 = vpop.f32.mrf.mxu0
        %v300 = vadd.f32 0.0, %v299
        %301 = vmatmul.f32.gmra.mxu0 %v238
        %v302 = vpop.f32.mrf.mxu0
        %v303 = vadd.f32 0.0, %v302
        %304 = vmatmul.f32.gmra.mxu0 %v241
        %v305 = vpop.f32.mrf.mxu0
        %v306 = vadd.f32 0.0, %v305
        %307 = vmatmul.f32.gmra.mxu0 %v244
        %v308 = vpop.f32.mrf.mxu0
        %v309 = vadd.f32 0.0, %v308
        %310 = vmatmul.f32.gmra.mxu0 %v247
        %v311 = vpop.f32.mrf.mxu0
        %v312 = vadd.f32 0.0, %v311
        %313 = vmatmul.f32.gmra.mxu0 %v250
        %v314 = vpop.f32.mrf.mxu0
        %v315 = vadd.f32 0.0, %v314
        %316 = vdwg.mxu0
        %vm317 = vcmask 654336
        %v318 = vsel %vm317, %v270, 0.0
        %v319 = vsel %vm317, %v273, 0.0
        %v320 = vsel %vm317, %v276, 0.0
        %v321 = vsel %vm317, %v279, 0.0
        %v322 = vsel %vm317, %v282, 0.0
        %v323 = vsel %vm317, %v285, 0.0
        %v324 = vsel %vm317, %v288, 0.0
        %v325 = vsel %vm317, %v291, 0.0
        %v326 = vsel %vm317, %v294, 0.0
        %v327 = vsel %vm317, %v297, 0.0
        %v328 = vsel %vm317, %v300, 0.0
        %v329 = vsel %vm317, %v303, 0.0
        %v330 = vsel %vm317, %v306, 0.0
        %v331 = vsel %vm317, %v309, 0.0
        %v332 = vsel %vm317, %v312, 0.0
        %v333 = vsel %vm317, %v315, 0.0
        %334 = vst [vmem:[%s168] sm:$0xff] %v318
        %335 = vst [vmem:[%s168 + $0x8] sm:$0xff] %v319
        %336 = vst [vmem:[%s168 + $0x10] sm:$0xff] %v320
        %337 = vst [vmem:[%s168 + $0x18] sm:$0xff] %v321
        %338 = vst [vmem:[%s168 + $0x20] sm:$0xff] %v322
        %339 = vst [vmem:[%s168 + $0x28] sm:$0xff] %v323
        %340 = vst [vmem:[%s168 + $0x30] sm:$0xff] %v324
        %341 = vst [vmem:[%s168 + $0x38] sm:$0xff] %v325
        %342 = vst [vmem:[%s168 + $0x40] sm:$0xff] %v326
        %343 = vst [vmem:[%s168 + $0x48] sm:$0xff] %v327
        %344 = vst [vmem:[%s168 + $0x50] sm:$0xff] %v328
        %345 = vst [vmem:[%s168 + $0x58] sm:$0xff] %v329
        %346 = vst [vmem:[%s168 + $0x60] sm:$0xff] %v330
        %347 = vst [vmem:[%s168 + $0x68] sm:$0xff] %v331
        %348 = vst [vmem:[%s168 + $0x70] sm:$0xff] %v332
        %349 = vst [vmem:[%s168 + $0x78] sm:$0xff] %v333
        %366 = vrot.lane.b32.xlu0 %v270, 64
        %v367 = vpop.permute.xlu0 %366
        %368 = vrot.lane.b32.xlu0 %v273, 64
        %v369 = vpop.permute.xlu0 %368
        %370 = vrot.lane.b32.xlu0 %v276, 64
        %v371 = vpop.permute.xlu0 %370
        %372 = vrot.lane.b32.xlu0 %v279, 64
        %v373 = vpop.permute.xlu0 %372
        %374 = vrot.lane.b32.xlu0 %v282, 64
        %v375 = vpop.permute.xlu0 %374
        %376 = vrot.lane.b32.xlu0 %v285, 64
        %v377 = vpop.permute.xlu0 %376
        %378 = vrot.lane.b32.xlu0 %v288, 64
        %v379 = vpop.permute.xlu0 %378
        %380 = vrot.lane.b32.xlu0 %v291, 64
        %v381 = vpop.permute.xlu0 %380
        %382 = vrot.lane.b32.xlu0 %v294, 64
        %v383 = vpop.permute.xlu0 %382
        %384 = vrot.lane.b32.xlu0 %v297, 64
        %v385 = vpop.permute.xlu0 %384
        %386 = vrot.lane.b32.xlu0 %v300, 64
        %v387 = vpop.permute.xlu0 %386
        %388 = vrot.lane.b32.xlu0 %v303, 64
        %v389 = vpop.permute.xlu0 %388
        %390 = vrot.lane.b32.xlu0 %v306, 64
        %v391 = vpop.permute.xlu0 %390
        %392 = vrot.lane.b32.xlu0 %v309, 64
        %v393 = vpop.permute.xlu0 %392
        %394 = vrot.lane.b32.xlu0 %v312, 64
        %v395 = vpop.permute.xlu0 %394
        %396 = vrot.lane.b32.xlu0 %v315, 64
        %v397 = vpop.permute.xlu0 %396
        %414 = vxpose.xlu0.b32.start [1/16] %v367, 128
        %415 = vxpose.xlu0.b32.cont [2/16] %v369, 128
        %416 = vxpose.xlu0.b32.cont [3/16] %v371, 128
        %417 = vxpose.xlu0.b32.cont [4/16] %v373, 128
        %418 = vxpose.xlu0.b32.cont [5/16] %v375, 128
        %419 = vxpose.xlu0.b32.cont [6/16] %v377, 128
        %420 = vxpose.xlu0.b32.cont [7/16] %v379, 128
        %421 = vxpose.xlu0.b32.cont [8/16] %v381, 128
        %422 = vxpose.xlu0.b32.cont [9/16] %v383, 128
        %423 = vxpose.xlu0.b32.cont [10/16] %v385, 128
        %424 = vxpose.xlu0.b32.cont [11/16] %v387, 128
        %425 = vxpose.xlu0.b32.cont [12/16] %v389, 128
        %426 = vxpose.xlu0.b32.cont [13/16] %v391, 128
        %427 = vxpose.xlu0.b32.cont [14/16] %v393, 128
        %428 = vxpose.xlu0.b32.cont [15/16] %v395, 128
        %429 = vxpose.xlu0.b32.end [16/16] %v397, 128
        %v430 = vpop.trf.xlu0
        %v431 = vpop.trf.xlu0
        %v432 = vpop.trf.xlu0
        %v433 = vpop.trf.xlu0
        %v434 = vpop.trf.xlu0
        %v435 = vpop.trf.xlu0
        %v436 = vpop.trf.xlu0
        %v437 = vpop.trf.xlu0
        %v438 = vpop.trf.xlu0
        %v439 = vpop.trf.xlu0
        %v440 = vpop.trf.xlu0
        %v441 = vpop.trf.xlu0
        %v442 = vpop.trf.xlu0
        %v443 = vpop.trf.xlu0
        %v444 = vpop.trf.xlu0
        %v445 = vpop.trf.xlu0
        %446 = vst [vmem:[%s175] sm:$0xff] %v430
        %s447 = sand.u32 %s76, 1
        %s448 = scalar_lea.sflag [#allocation3], %s447
        %s449 = sand.u32 %s76, 1
        %s450 = smul.addr %s449, 128
        %s451 = scalar_lea.vmem [#allocation2], %s450
        %s452 = sand.u32 %s102, 1
        %s453 = scalar_lea.sflag [#allocation5], %s452
        %s454 = sand.u32 %s102, 1
        %s455 = smul.addr %s454, 8
        %s456 = scalar_lea.vmem [#allocation4], %s455
        // Predicated region
        $region29: #{tpu_custom_call.1} parent=27 // pred_check
          %p457 = pneg %p86
        $region30: #{tpu_custom_call.1} parent=27 // pred_check_branch
          %459 = sbr.rel (%p457) target = $region32
        $region31: #{tpu_custom_call.1} parent=27 // pred_region
          %s460 = smul.u32 16, %s21
          %462 = vsyncadd %s448, 0
          %s463 = smul.addr %s460, 8
          %s464 = scalar_lea.hbm %s2, %s463
          %s465 = sshll.u32 %s451, 4
          %s466 = int_to_ptr.vmem [resolvable:$true] %s465
          %s467 = sshll.u32 %s464, 4
          %s468 = int_to_ptr.hbm [resolvable:$true] %s467
          %473 = dma.vmem_to_hbm [thread:$0]  %s466, 2048, %s468, %s448, 128, 128, 8
        $region32: #{tpu_custom_call.1} parent=27 // pred_fallthru
          _
        // Predicated region
        $region33: #{tpu_custom_call.1} parent=27 // pred_check
          %p474 = pneg %p112
        $region34: #{tpu_custom_call.1} parent=27 // pred_check_branch
          %476 = sbr.rel (%p474) target = $region36
        $region35: #{tpu_custom_call.1} parent=27 // pred_region
          %478 = vsyncadd %s453, 0
          %s479 = smul.addr %s21, 8
          %s480 = scalar_lea.hbm %s3, %s479
          %s482 = sshll.u32 %s456, 4
          %s483 = int_to_ptr.vmem [resolvable:$true] %s482
          %s484 = sshll.u32 %s480, 4
          %s485 = int_to_ptr.hbm [resolvable:$true] %s484
          %487 = dma.vmem_to_hbm [thread:$0]  %s483, 128, %s485, %s453
        $region36: #{tpu_custom_call.1} parent=27 // pred_fallthru
          _
      $region28: #{tpu_custom_call.1} parent=5 // pred_fallthru
        _
      %p488 = scmp.le.s32.totalorder 2, %s16
      // Predicated region
      $region37: #{tpu_custom_call.1} parent=5 // pred_check
        %p489 = pneg %p488
      $region38: #{tpu_custom_call.1} parent=5 // pred_check_branch
        %491 = sbr.rel (%p489) target = $region40
      $region39: #{tpu_custom_call.1} parent=5 // pred_region
        %s492 = ssub.s32 %s16, 2
        // Predicated region
        $region41: #{tpu_custom_call.1} parent=39 // pred_check
          %p493 = pneg %p92
        $region42: #{tpu_custom_call.1} parent=39 // pred_check_branch
          %495 = sbr.rel (%p493) target = $region44
        $region43: #{tpu_custom_call.1} parent=39 // pred_region
          %s496 = sand.u32 %s77, 1
          %s497 = scalar_lea.sflag [#allocation3], %s496
          %s498 = sand.u32 %s77, 1
          %s499 = smul.addr %s498, 128
          %s500 = scalar_lea.vmem [#allocation2], %s499
          %502 = dma.done %s497, 2048
        $region44: #{tpu_custom_call.1} parent=39 // pred_fallthru
          _
        // Predicated region
        $region45: #{tpu_custom_call.1} parent=39 // pred_check
          %p503 = pneg %p118
        $region46: #{tpu_custom_call.1} parent=39 // pred_check_branch
          %505 = sbr.rel (%p503) target = $region48
        $region47: #{tpu_custom_call.1} parent=39 // pred_region
          %s506 = sand.u32 %s103, 1
          %s507 = scalar_lea.sflag [#allocation5], %s506
          %s508 = sand.u32 %s103, 1
          %s509 = smul.addr %s508, 8
          %s510 = scalar_lea.vmem [#allocation4], %s509
          %512 = dma.done %s507, 128
        $region48: #{tpu_custom_call.1} parent=39 // pred_fallthru
          _
      $region40: #{tpu_custom_call.1} parent=5 // pred_fallthru
        _
    $region6: #{tpu_custom_call.1} parent=1 // loop_footer
      %s20 = sadd.s32 1, %s16
    $region7: #{tpu_custom_call.1} parent=1 // loop_footer_branch
      %15 = sbr.rel target = $region3
    $region8: #{tpu_custom_call.1} parent=1 // loop_exit
      _
    %513 = vsyncpa [#allocation3], 1
    %s514 = scalar_lea.sflag [#allocation3], 1
    %515 = vsyncpa %s514, 1
    %516 = vsyncpa [#allocation5], 1
    %s517 = scalar_lea.sflag [#allocation5], 1
    %518 = vsyncpa %s517, 1

</llo_original>
